<compile_context>
chip_gen: v6e
topology: v6e:2x2x1
jax: 0.10.0
libtpu: 0.0.40
codegen_flags: <defaults>
</compile_context>

<pallas_src>
import functools

import jax
import jax.numpy as jnp
from jax.experimental import pallas as pl
from jax.experimental.pallas import tpu as pltpu


# ---------------------------------------------------------------------------
# Pass 1: sequential elementwise state scan  (state_t = x_t + decay*state_{t-1})
# ---------------------------------------------------------------------------
def state_scan_kernel(x_ref, decay_ref, s_ref, state_ref):
    """x_ref: (Tt, B, H), decay_ref: (1, H), s_ref: (Tt, B, H) out,
    state_ref: (B, H) VMEM scratch carried across sequential time chunks."""
    c = pl.program_id(0)

    @pl.when(c == 0)
    def _():
        state_ref[...] = jnp.zeros_like(state_ref)   # matches _init_state()

    decay = decay_ref[...]                           # (1, H), broadcasts over B
    t_chunk = x_ref.shape[0]

    def body(i, st):
        # state used at step i is the state *before* the update
        s_ref[i] = st
        return x_ref[i] + st * decay

    st_final = jax.lax.fori_loop(0, t_chunk, body, state_ref[...], unroll=True)
    state_ref[...] = st_final


# ---------------------------------------------------------------------------
# Pass 2: batched fused projections (one MXU pass per row tile, parallel)
# ---------------------------------------------------------------------------
def proj_kernel(x_ref, s_ref, wx_ref, ws_ref, o_ref):
    """x_ref/s_ref: (tm, H), wx_ref/ws_ref: (H, 2H), o_ref: (tm, H).
    pre[:, :H] == (xv @ Wv^T) @ Wo^T ; pre[:, H:] == xr @ Wr^T."""
    pre = jnp.dot(x_ref[...], wx_ref[...], preferred_element_type=jnp.float32)
    pre = pre + jnp.dot(s_ref[...], ws_ref[...], preferred_element_type=jnp.float32)
    h = o_ref.shape[-1]
    pre_v = pre[:, :h]
    pre_r = pre[:, h:]
    o_ref[...] = (jax.nn.sigmoid(pre_r) * pre_v).astype(o_ref.dtype)


def _round_up(n, m):
    return ((n + m - 1) // m) * m


@functools.partial(jax.jit, static_argnames=("t_chunk", "row_tile"))
def rwkv_block_forward(x, params, *, t_chunk=16, row_tile=256):
    """x: (B, T, H) float32.  Returns (B, T, H) float32."""
    B, T, H = x.shape
    x = x.astype(jnp.float32)

    # ---- one-time weight prep (hoisted out of the kernels) -----------------
    wv_t = params["w_value"].T            # (H, H): y = x @ Wv^T
    wr_t = params["w_receptance"].T
    wo_t = params["w_output"].T
    wvo = wv_t @ wo_t                     # fused value->output projection
    tmv = params["time_mix_v"]
    tmr = params["time_mix_r"]
    # fold time-mix diagonals into the weights; concat v/r paths along N (2H)
    w_x = jnp.concatenate([tmv[:, None] * wvo, tmr[:, None] * wr_t], axis=1)
    w_s = jnp.concatenate([(1.0 - tmv)[:, None] * wvo,
                           (1.0 - tmr)[:, None] * wr_t], axis=1)
    decay = jnp.exp(-jnp.exp(params["time_decay"])).reshape(1, H).astype(jnp.float32)
    # NOTE: the reference forward computes k = self.key(...) but never uses it;
    # Wk / time_mix_k are intentionally omitted (no DMA, no VMEM residency).

    # ---- pass 1: sequential state recurrence over time chunks --------------
    x_tbh = jnp.transpose(x, (1, 0, 2))                       # (T, B, H) time-major
    tt = min(t_chunk, T)
    t_pad = pl.cdiv(T, tt) * tt
    if t_pad != T:
        x_tbh = jnp.pad(x_tbh, ((0, t_pad - T), (0, 0), (0, 0)))

    states = pl.pallas_call(
        state_scan_kernel,
        out_shape=jax.ShapeDtypeStruct((t_pad, B, H), jnp.float32),
        grid_spec=pltpu.PrefetchScalarGridSpec(
            num_scalar_prefetch=0,
            grid=(t_pad // tt,),
            in_specs=[
                pl.BlockSpec((tt, B, H), lambda c: (c, 0, 0)),   # x chunk
                pl.BlockSpec((1, H), lambda c: (0, 0)),          # decay (resident)
            ],
            out_specs=pl.BlockSpec((tt, B, H), lambda c: (c, 0, 0)),
            scratch_shapes=[pltpu.VMEM((B, H), jnp.float32)],    # carried state
        ),
        compiler_params=pltpu.CompilerParams(
            dimension_semantics=("arbitrary",),                  # true recurrence
        ),
    )(x_tbh, decay)

    # ---- pass 2: batched projections over all (padded) timesteps -----------
    rows = t_pad * B
    x2d = x_tbh.reshape(rows, H)
    s2d = states.reshape(rows, H)
    tm = min(row_tile, _round_up(rows, 8))
    rows_pad = pl.cdiv(rows, tm) * tm
    if rows_pad != rows:
        x2d = jnp.pad(x2d, ((0, rows_pad - rows), (0, 0)))
        s2d = jnp.pad(s2d, ((0, rows_pad - rows), (0, 0)))

    out2d = pl.pallas_call(
        proj_kernel,
        out_shape=jax.ShapeDtypeStruct((rows_pad, H), jnp.float32),
        grid_spec=pltpu.PrefetchScalarGridSpec(
            num_scalar_prefetch=0,
            grid=(rows_pad // tm,),
            in_specs=[
                pl.BlockSpec((tm, H), lambda i: (i, 0)),         # x rows
                pl.BlockSpec((tm, H), lambda i: (i, 0)),         # state rows
                pl.BlockSpec((H, 2 * H), lambda i: (0, 0)),      # W_x (resident)
                pl.BlockSpec((H, 2 * H), lambda i: (0, 0)),      # W_s (resident)
            ],
            out_specs=pl.BlockSpec((tm, H), lambda i: (i, 0)),
        ),
        compiler_params=pltpu.CompilerParams(
            dimension_semantics=("parallel",),                   # no cross-tile dep
        ),
    )(x2d, s2d, w_x, w_s)

    out_tbh = out2d[:rows].reshape(t_pad, B, H)[:T]              # drop time padding
    return jnp.transpose(out_tbh, (1, 0, 2))                     # back to (B, T, H)


# ---------------------------------------------------------------------------
# Pure-JAX reference mirroring the PyTorch forward (for validation)
# ---------------------------------------------------------------------------
def rwkv_block_reference(x, params):
    B, T, H = x.shape
    tmv = params["time_mix_v"]
    tmr = params["time_mix_r"]
    decay = jnp.exp(-jnp.exp(params["time_decay"]))
    wv = params["w_value"]
    wr = params["w_receptance"]
    wo = params["w_output"]

    def step(state, xt):
        xv = xt * tmv + state * (1.0 - tmv)
        xr = xt * tmr + state * (1.0 - tmr)
        v = xv @ wv.T
        r = jax.nn.sigmoid(xr @ wr.T)
        new_state = xt + state * decay
        out = r * (v @ wo.T)
        return new_state, out

    state0 = jnp.zeros((B, H), jnp.float32)
    _, outs = jax.lax.scan(step, state0, jnp.transpose(x, (1, 0, 2)))
    return jnp.transpose(outs, (1, 0, 2))


def make_params(key, hidden_dim):
    k1, k2, k3, k4, k5 = jax.random.split(key, 5)
    return {
        "time_decay": jax.random.normal(k1, (hidden_dim,), jnp.float32) * 0.01,
        "time_mix_k": jnp.ones((hidden_dim,), jnp.float32) * 0.5,
        "time_mix_v": jnp.ones((hidden_dim,), jnp.float32) * 0.5,
        "time_mix_r": jnp.ones((hidden_dim,), jnp.float32) * 0.5,
        "w_key":        jax.random.normal(k2, (hidden_dim, hidden_dim), jnp.float32) * 0.1,
        "w_value":      jax.random.normal(k3, (hidden_dim, hidden_dim), jnp.float32) * 0.1,
        "w_receptance": jax.random.normal(k4, (hidden_dim, hidden_dim), jnp.float32) * 0.1,
        "w_output":     jax.random.normal(k5, (hidden_dim, hidden_dim), jnp.float32) * 0.1,
    }


if __name__ == "__main__":
    batch, seq_len, hidden = 2, 8, 32
    key = jax.random.PRNGKey(0)
    kx, kp = jax.random.split(key)

    x = jax.random.normal(kx, (batch, seq_len, hidden), jnp.float32)
    params = make_params(kp, hidden)

    out = rwkv_block_forward(x, params)
    out = jax.block_until_ready(out)

    ref = rwkv_block_reference(x, params)
    assert out.shape == (batch, seq_len, hidden)
    # fused W_vo / folded time-mix changes f32 accumulation order slightly
    assert jnp.allclose(out, ref, atol=1e-4, rtol=1e-4), "mismatch vs JAX reference"

    print("KERNEL_OK")
</pallas_src>

<mosaic_0001>
module attributes {stable_mosaic.version = 11 : i64} {
  func.func @proj_kernel(%arg0: i32, %arg1: memref<16x32xf32, #tpu.memory_space<vmem>>, %arg2: memref<16x32xf32, #tpu.memory_space<vmem>>, %arg3: memref<32x64xf32, #tpu.memory_space<vmem>>, %arg4: memref<32x64xf32, #tpu.memory_space<vmem>>, %arg5: memref<16x32xf32, #tpu.memory_space<vmem>>) attributes {dimension_semantics = [#tpu.dimension_semantics<parallel>], iteration_bounds = array<i64: 1>, scalar_prefetch = 0 : i64, scratch_operands = 0 : i64, tpu.core_type = #tpu.core_type<tc>, window_params = [{transform_indices = @transform_0, window_bounds = array<i64: 16, 32>}, {transform_indices = @transform_1, window_bounds = array<i64: 16, 32>}, {pipeline_mode = #tpu.pipeline_mode<synchronous>, transform_indices = @transform_2, window_bounds = array<i64: 32, 64>}, {pipeline_mode = #tpu.pipeline_mode<synchronous>, transform_indices = @transform_3, window_bounds = array<i64: 32, 64>}, {transform_indices = @transform_4, window_bounds = array<i64: 16, 32>}]} {
    %c0 = arith.constant 0 : index
    %c0_0 = arith.constant 0 : index
    %0 = vector.load %arg1[%c0, %c0_0] : memref<16x32xf32, #tpu.memory_space<vmem>>, vector<16x32xf32>
    %c0_1 = arith.constant 0 : index
    %c0_2 = arith.constant 0 : index
    %1 = vector.load %arg3[%c0_1, %c0_2] : memref<32x64xf32, #tpu.memory_space<vmem>>, vector<32x64xf32>
    %cst = arith.constant dense<0.000000e+00> : vector<16x64xf32>
    %2 = tpu.matmul %0, %1, %cst {dimension_numbers = #tpu.dot_dimension_numbers<[1], [0], [0], [1], [0, 0, 1, 1], [], []>} : vector<16x32xf32>, vector<32x64xf32>, vector<16x64xf32> -> vector<16x64xf32>
    %c0_3 = arith.constant 0 : index
    %c0_4 = arith.constant 0 : index
    %3 = vector.load %arg2[%c0_3, %c0_4] : memref<16x32xf32, #tpu.memory_space<vmem>>, vector<16x32xf32>
    %c0_5 = arith.constant 0 : index
    %c0_6 = arith.constant 0 : index
    %4 = vector.load %arg4[%c0_5, %c0_6] : memref<32x64xf32, #tpu.memory_space<vmem>>, vector<32x64xf32>
    %cst_7 = arith.constant dense<0.000000e+00> : vector<16x64xf32>
    %5 = tpu.matmul %3, %4, %cst_7 {dimension_numbers = #tpu.dot_dimension_numbers<[1], [0], [0], [1], [0, 0, 1, 1], [], []>} : vector<16x32xf32>, vector<32x64xf32>, vector<16x64xf32> -> vector<16x64xf32>
    %6 = arith.addf %2, %5 : vector<16x64xf32>
    %7 = vector.extract_strided_slice %6 {offsets = [0, 0], sizes = [16, 32], strides = [1, 1]} : vector<16x64xf32> to vector<16x32xf32>
    %8 = vector.extract_strided_slice %6 {offsets = [0, 32], sizes = [16, 32], strides = [1, 1]} : vector<16x64xf32> to vector<16x32xf32>
    %9 = arith.negf %8 : vector<16x32xf32>
    %10 = math.exp %9 : vector<16x32xf32>
    %cst_8 = arith.constant 1.000000e+00 : f32
    %11 = vector.broadcast %cst_8 : f32 to vector<16x32xf32>
    %12 = arith.addf %11, %10 : vector<16x32xf32>
    %13 = arith.divf %11, %12 : vector<16x32xf32>
    %14 = arith.mulf %13, %7 : vector<16x32xf32>
    %c0_9 = arith.constant 0 : index
    %c0_10 = arith.constant 0 : index
    %15 = vector.load %arg5[%c0_9, %c0_10] : memref<16x32xf32, #tpu.memory_space<vmem>>, vector<16x32xf32>
    tpu.vector_store %arg5[%c0_9, %c0_10], %14 {strides = array<i32>} : memref<16x32xf32, #tpu.memory_space<vmem>>, vector<16x32xf32>,
    return
  }
  func.func @transform_0(%arg0: i32) -> (i32, i32) {
    %c0_i32 = arith.constant 0 : i32
    %c0_i32_0 = arith.constant 0 : i32
    return %arg0, %c0_i32 : i32, i32
  }
  func.func @transform_1(%arg0: i32) -> (i32, i32) {
    %c0_i32 = arith.constant 0 : i32
    %c0_i32_0 = arith.constant 0 : i32
    return %arg0, %c0_i32 : i32, i32
  }
  func.func @transform_2(%arg0: i32) -> (i32, i32) {
    %c0_i32 = arith.constant 0 : i32
    %c0_i32_0 = arith.constant 0 : i32
    %c0_i32_1 = arith.constant 0 : i32
    return %c0_i32, %c0_i32_0 : i32, i32
  }
  func.func @transform_3(%arg0: i32) -> (i32, i32) {
    %c0_i32 = arith.constant 0 : i32
    %c0_i32_0 = arith.constant 0 : i32
    %c0_i32_1 = arith.constant 0 : i32
    return %c0_i32, %c0_i32_0 : i32, i32
  }
  func.func @transform_4(%arg0: i32) -> (i32, i32) {
    %c0_i32 = arith.constant 0 : i32
    %c0_i32_0 = arith.constant 0 : i32
    return %arg0, %c0_i32 : i32, i32
  }
}

module attributes {stable_mosaic.version = 11 : i64} {
  func.func @state_scan_kernel(%arg0: i32, %arg1: memref<8x2x32xf32, #tpu.memory_space<vmem>>, %arg2: memref<1x32xf32, #tpu.memory_space<vmem>>, %arg3: memref<8x2x32xf32, #tpu.memory_space<vmem>>, %arg4: memref<2x32xf32, #tpu.memory_space<vmem>>) attributes {dimension_semantics = [#tpu.dimension_semantics<arbitrary>], iteration_bounds = array<i64: 1>, scalar_prefetch = 0 : i64, scratch_operands = 1 : i64, tpu.core_type = #tpu.core_type<tc>, window_params = [{transform_indices = @transform_0, window_bounds = array<i64: 8, 2, 32>}, {pipeline_mode = #tpu.pipeline_mode<synchronous>, transform_indices = @transform_1, window_bounds = array<i64: 1, 32>}, {transform_indices = @transform_2, window_bounds = array<i64: 8, 2, 32>}]} {
    %c0_i32 = arith.constant 0 : i32
    %0 = arith.cmpi eq, %arg0, %c0_i32 : i32
    %1 = arith.extui %0 : i1 to i32
    %c0_i32_0 = arith.constant 0 : i32
    %2 = arith.cmpi ne, %1, %c0_i32_0 : i32
    scf.if %2 {
      %cst = arith.constant 0.000000e+00 : f32
      %86 = vector.broadcast %cst : f32 to vector<2x32xf32>
      %c0_39 = arith.constant 0 : index
      %c0_40 = arith.constant 0 : index
      %87 = vector.load %arg4[%c0_39, %c0_40] : memref<2x32xf32, #tpu.memory_space<vmem>>, vector<2x32xf32>
      tpu.vector_store %arg4[%c0_39, %c0_40], %86 {strides = array<i32>} : memref<2x32xf32, #tpu.memory_space<vmem>>, vector<2x32xf32>,
    } else {
    }
    %c0 = arith.constant 0 : index
    %c0_1 = arith.constant 0 : index
    %3 = vector.load %arg2[%c0, %c0_1] : memref<1x32xf32, #tpu.memory_space<vmem>>, vector<1x32xf32>
    %c0_2 = arith.constant 0 : index
    %c0_3 = arith.constant 0 : index
    %4 = vector.load %arg4[%c0_2, %c0_3] : memref<2x32xf32, #tpu.memory_space<vmem>>, vector<2x32xf32>
    %c0_i32_4 = arith.constant 0 : i32
    %5 = arith.index_cast %c0_i32_4 : i32 to index
    %c0_5 = arith.constant 0 : index
    %c0_6 = arith.constant 0 : index
    %6 = vector.load %arg3[%5, %c0_5, %c0_6] : memref<8x2x32xf32, #tpu.memory_space<vmem>>, vector<1x2x32xf32>
    %7 = vector.shape_cast %6 : vector<1x2x32xf32> to vector<2x32xf32>
    %8 = vector.shape_cast %4 : vector<2x32xf32> to vector<1x2x32xf32>
    tpu.vector_store %arg3[%5, %c0_5, %c0_6], %8 {strides = array<i32>} : memref<8x2x32xf32, #tpu.memory_space<vmem>>, vector<1x2x32xf32>,
    %9 = arith.index_cast %c0_i32_4 : i32 to index
    %c0_7 = arith.constant 0 : index
    %c0_8 = arith.constant 0 : index
    %10 = vector.load %arg1[%9, %c0_7, %c0_8] : memref<8x2x32xf32, #tpu.memory_space<vmem>>, vector<1x2x32xf32>
    %11 = vector.shape_cast %10 : vector<1x2x32xf32> to vector<2x32xf32>
    %12 = vector.broadcast %3 : vector<1x32xf32> to vector<2x32xf32>
    %13 = arith.mulf %4, %12 : vector<2x32xf32>
    %14 = arith.addf %11, %13 : vector<2x32xf32>
    %c1_i32 = arith.constant 1 : i32
    %15 = arith.index_cast %c1_i32 : i32 to index
    %c0_9 = arith.constant 0 : index
    %c0_10 = arith.constant 0 : index
    %16 = vector.load %arg3[%15, %c0_9, %c0_10] : memref<8x2x32xf32, #tpu.memory_space<vmem>>, vector<1x2x32xf32>
    %17 = vector.shape_cast %16 : vector<1x2x32xf32> to vector<2x32xf32>
    %18 = vector.shape_cast %14 : vector<2x32xf32> to vector<1x2x32xf32>
    tpu.vector_store %arg3[%15, %c0_9, %c0_10], %18 {strides = array<i32>} : memref<8x2x32xf32, #tpu.memory_space<vmem>>, vector<1x2x32xf32>,
    %19 = arith.index_cast %c1_i32 : i32 to index
    %c0_11 = arith.constant 0 : index
    %c0_12 = arith.constant 0 : index
    %20 = vector.load %arg1[%19, %c0_11, %c0_12] : memref<8x2x32xf32, #tpu.memory_space<vmem>>, vector<1x2x32xf32>
    %21 = vector.shape_cast %20 : vector<1x2x32xf32> to vector<2x32xf32>
    %22 = vector.broadcast %3 : vector<1x32xf32> to vector<2x32xf32>
    %23 = arith.mulf %14, %22 : vector<2x32xf32>
    %24 = arith.addf %21, %23 : vector<2x32xf32>
    %c2_i32 = arith.constant 2 : i32
    %25 = arith.index_cast %c2_i32 : i32 to index
    %c0_13 = arith.constant 0 : index
    %c0_14 = arith.constant 0 : index
    %26 = vector.load %arg3[%25, %c0_13, %c0_14] : memref<8x2x32xf32, #tpu.memory_space<vmem>>, vector<1x2x32xf32>
    %27 = vector.shape_cast %26 : vector<1x2x32xf32> to vector<2x32xf32>
    %28 = vector.shape_cast %24 : vector<2x32xf32> to vector<1x2x32xf32>
    tpu.vector_store %arg3[%25, %c0_13, %c0_14], %28 {strides = array<i32>} : memref<8x2x32xf32, #tpu.memory_space<vmem>>, vector<1x2x32xf32>,
    %29 = arith.index_cast %c2_i32 : i32 to index
    %c0_15 = arith.constant 0 : index
    %c0_16 = arith.constant 0 : index
    %30 = vector.load %arg1[%29, %c0_15, %c0_16] : memref<8x2x32xf32, #tpu.memory_space<vmem>>, vector<1x2x32xf32>
    %31 = vector.shape_cast %30 : vector<1x2x32xf32> to vector<2x32xf32>
    %32 = vector.broadcast %3 : vector<1x32xf32> to vector<2x32xf32>
    %33 = arith.mulf %24, %32 : vector<2x32xf32>
    %34 = arith.addf %31, %33 : vector<2x32xf32>
    %c3_i32 = arith.constant 3 : i32
    %35 = arith.index_cast %c3_i32 : i32 to index
    %c0_17 = arith.constant 0 : index
    %c0_18 = arith.constant 0 : index
    %36 = vector.load %arg3[%35, %c0_17, %c0_18] : memref<8x2x32xf32, #tpu.memory_space<vmem>>, vector<1x2x32xf32>
    %37 = vector.shape_cast %36 : vector<1x2x32xf32> to vector<2x32xf32>
    %38 = vector.shape_cast %34 : vector<2x32xf32> to vector<1x2x32xf32>
    tpu.vector_store %arg3[%35, %c0_17, %c0_18], %38 {strides = array<i32>} : memref<8x2x32xf32, #tpu.memory_space<vmem>>, vector<1x2x32xf32>,
    %39 = arith.index_cast %c3_i32 : i32 to index
    %c0_19 = arith.constant 0 : index
    %c0_20 = arith.constant 0 : index
    %40 = vector.load %arg1[%39, %c0_19, %c0_20] : memref<8x2x32xf32, #tpu.memory_space<vmem>>, vector<1x2x32xf32>
    %41 = vector.shape_cast %40 : vector<1x2x32xf32> to vector<2x32xf32>
    %42 = vector.broadcast %3 : vector<1x32xf32> to vector<2x32xf32>
    %43 = arith.mulf %34, %42 : vector<2x32xf32>
    %44 = arith.addf %41, %43 : vector<2x32xf32>
    %c4_i32 = arith.constant 4 : i32
    %45 = arith.index_cast %c4_i32 : i32 to index
    %c0_21 = arith.constant 0 : index
    %c0_22 = arith.constant 0 : index
    %46 = vector.load %arg3[%45, %c0_21, %c0_22] : memref<8x2x32xf32, #tpu.memory_space<vmem>>, vector<1x2x32xf32>
    %47 = vector.shape_cast %46 : vector<1x2x32xf32> to vector<2x32xf32>
    %48 = vector.shape_cast %44 : vector<2x32xf32> to vector<1x2x32xf32>
    tpu.vector_store %arg3[%45, %c0_21, %c0_22], %48 {strides = array<i32>} : memref<8x2x32xf32, #tpu.memory_space<vmem>>, vector<1x2x32xf32>,
    %49 = arith.index_cast %c4_i32 : i32 to index
    %c0_23 = arith.constant 0 : index
    %c0_24 = arith.constant 0 : index
    %50 = vector.load %arg1[%49, %c0_23, %c0_24] : memref<8x2x32xf32, #tpu.memory_space<vmem>>, vector<1x2x32xf32>
    %51 = vector.shape_cast %50 : vector<1x2x32xf32> to vector<2x32xf32>
    %52 = vector.broadcast %3 : vector<1x32xf32> to vector<2x32xf32>
    %53 = arith.mulf %44, %52 : vector<2x32xf32>
    %54 = arith.addf %51, %53 : vector<2x32xf32>
    %c5_i32 = arith.constant 5 : i32
    %55 = arith.index_cast %c5_i32 : i32 to index
    %c0_25 = arith.constant 0 : index
    %c0_26 = arith.constant 0 : index
    %56 = vector.load %arg3[%55, %c0_25, %c0_26] : memref<8x2x32xf32, #tpu.memory_space<vmem>>, vector<1x2x32xf32>
    %57 = vector.shape_cast %56 : vector<1x2x32xf32> to vector<2x32xf32>
    %58 = vector.shape_cast %54 : vector<2x32xf32> to vector<1x2x32xf32>
    tpu.vector_store %arg3[%55, %c0_25, %c0_26], %58 {strides = array<i32>} : memref<8x2x32xf32, #tpu.memory_space<vmem>>, vector<1x2x32xf32>,
    %59 = arith.index_cast %c5_i32 : i32 to index
    %c0_27 = arith.constant 0 : index
    %c0_28 = arith.constant 0 : index
    %60 = vector.load %arg1[%59, %c0_27, %c0_28] : memref<8x2x32xf32, #tpu.memory_space<vmem>>, vector<1x2x32xf32>
    %61 = vector.shape_cast %60 : vector<1x2x32xf32> to vector<2x32xf32>
    %62 = vector.broadcast %3 : vector<1x32xf32> to vector<2x32xf32>
    %63 = arith.mulf %54, %62 : vector<2x32xf32>
    %64 = arith.addf %61, %63 : vector<2x32xf32>
    %c6_i32 = arith.constant 6 : i32
    %65 = arith.index_cast %c6_i32 : i32 to index
    %c0_29 = arith.constant 0 : index
    %c0_30 = arith.constant 0 : index
    %66 = vector.load %arg3[%65, %c0_29, %c0_30] : memref<8x2x32xf32, #tpu.memory_space<vmem>>, vector<1x2x32xf32>
    %67 = vector.shape_cast %66 : vector<1x2x32xf32> to vector<2x32xf32>
    %68 = vector.shape_cast %64 : vector<2x32xf32> to vector<1x2x32xf32>
    tpu.vector_store %arg3[%65, %c0_29, %c0_30], %68 {strides = array<i32>} : memref<8x2x32xf32, #tpu.memory_space<vmem>>, vector<1x2x32xf32>,
    %69 = arith.index_cast %c6_i32 : i32 to index
    %c0_31 = arith.constant 0 : index
    %c0_32 = arith.constant 0 : index
    %70 = vector.load %arg1[%69, %c0_31, %c0_32] : memref<8x2x32xf32, #tpu.memory_space<vmem>>, vector<1x2x32xf32>
    %71 = vector.shape_cast %70 : vector<1x2x32xf32> to vector<2x32xf32>
    %72 = vector.broadcast %3 : vector<1x32xf32> to vector<2x32xf32>
    %73 = arith.mulf %64, %72 : vector<2x32xf32>
    %74 = arith.addf %71, %73 : vector<2x32xf32>
    %c7_i32 = arith.constant 7 : i32
    %75 = arith.index_cast %c7_i32 : i32 to index
    %c0_33 = arith.constant 0 : index
    %c0_34 = arith.constant 0 : index
    %76 = vector.load %arg3[%75, %c0_33, %c0_34] : memref<8x2x32xf32, #tpu.memory_space<vmem>>, vector<1x2x32xf32>
    %77 = vector.shape_cast %76 : vector<1x2x32xf32> to vector<2x32xf32>
    %78 = vector.shape_cast %74 : vector<2x32xf32> to vector<1x2x32xf32>
    tpu.vector_store %arg3[%75, %c0_33, %c0_34], %78 {strides = array<i32>} : memref<8x2x32xf32, #tpu.memory_space<vmem>>, vector<1x2x32xf32>,
    %79 = arith.index_cast %c7_i32 : i32 to index
    %c0_35 = arith.constant 0 : index
    %c0_36 = arith.constant 0 : index
    %80 = vector.load %arg1[%79, %c0_35, %c0_36] : memref<8x2x32xf32, #tpu.memory_space<vmem>>, vector<1x2x32xf32>
    %81 = vector.shape_cast %80 : vector<1x2x32xf32> to vector<2x32xf32>
    %82 = vector.broadcast %3 : vector<1x32xf32> to vector<2x32xf32>
    %83 = arith.mulf %74, %82 : vector<2x32xf32>
    %84 = arith.addf %81, %83 : vector<2x32xf32>
    %c8_i32 = arith.constant 8 : i32
    %c0_37 = arith.constant 0 : index
    %c0_38 = arith.constant 0 : index
    %85 = vector.load %arg4[%c0_37, %c0_38] : memref<2x32xf32, #tpu.memory_space<vmem>>, vector<2x32xf32>
    tpu.vector_store %arg4[%c0_37, %c0_38], %84 {strides = array<i32>} : memref<2x32xf32, #tpu.memory_space<vmem>>, vector<2x32xf32>,
    return
  }
  func.func @transform_0(%arg0: i32) -> (i32, i32, i32) {
    %c0_i32 = arith.constant 0 : i32
    %c0_i32_0 = arith.constant 0 : i32
    %c0_i32_1 = arith.constant 0 : i32
    return %arg0, %c0_i32, %c0_i32_0 : i32, i32, i32
  }
  func.func @transform_1(%arg0: i32) -> (i32, i32) {
    %c0_i32 = arith.constant 0 : i32
    %c0_i32_0 = arith.constant 0 : i32
    %c0_i32_1 = arith.constant 0 : i32
    return %c0_i32, %c0_i32_0 : i32, i32
  }
  func.func @transform_2(%arg0: i32) -> (i32, i32, i32) {
    %c0_i32 = arith.constant 0 : i32
    %c0_i32_0 = arith.constant 0 : i32
    %c0_i32_1 = arith.constant 0 : i32
    return %arg0, %c0_i32, %c0_i32_0 : i32, i32, i32
  }
}

</mosaic_0001>

<llo_original>
// kernel: rwkv_block_forward.2
$region0: #{rwkv_block_forward.2}
  #allocation0 [shape = 'u32[]', space=smem, size = 0x4, offset = 0x4, fixed_abs, tag = 'smem constant byte address 0x4 - core index']
  #allocation1 [shape = 'u32[144,128]{1,0:T(1,128)}', space=vmem, size = 0x12000, scoped, tag = 'internal scratch']
  #allocation2 [shape = 'f32[2,32]{1,0:T(2,128)}', space=vmem, size = 0x400, scoped, tag = 'scratch operand']
  %s0 = inlined_call_operand.vmem [shape: f32[8,2,32], index: 0, kind: input, shape index: {}]
  %s1 = inlined_call_operand.vmem [shape: f32[1,32], index: 1, kind: input, shape index: {}]
  %s2 = inlined_call_operand.vmem [shape: f32[8,2,32], index: 2, kind: output, shape index: {}]
  %s3 = sld [smem:[#allocation0]]
  $region22: #{rwkv_block_forward.2} parent=0
    _
  %s5 = ssub.s32 1, %s3
  %s6 = scalar_select 0, %s5, %s3
  // Predicated region
  $region2: #{rwkv_block_forward.2} parent=0 // pred_check
    _
  $region3: #{rwkv_block_forward.2} parent=0 // pred_check_branch
    %8 = sbr.rel (0) target = $region5
  $region4: #{rwkv_block_forward.2} parent=0 // pred_region
    _
  $region5: #{rwkv_block_forward.2} parent=0 // pred_fallthru
    _
  // Predicated region
  $region6: #{rwkv_block_forward.2} parent=0 // pred_check
    _
  $region7: #{rwkv_block_forward.2} parent=0 // pred_check_branch
    %10 = sbr.rel (0) target = $region9
  $region8: #{rwkv_block_forward.2} parent=0 // pred_region
    _
  $region9: #{rwkv_block_forward.2} parent=0 // pred_fallthru
    _
  %p11 = scmp.eq.s32.totalorder 0, 0
  // Predicated region
  $region10: #{rwkv_block_forward.2} parent=0 // pred_check
    %p12 = pneg %p11
  $region11: #{rwkv_block_forward.2} parent=0 // pred_check_branch
    %14 = sbr.rel (%p12) target = $region13
  $region12: #{rwkv_block_forward.2} parent=0 // pred_region
    %vm15 = vcmask 254976
    %16 = vst.msk [vmem:[#allocation2] sm:$0x3] %vm15, 0.0
  $region13: #{rwkv_block_forward.2} parent=0 // pred_fallthru
    _
  %v17 = vld [vmem:[%s1] sm:$0x1]
  %v18 = vld [vmem:[#allocation2] sm:$0x3]
  %vm19 = vcmask 254976
  %20 = vst.msk [vmem:[%s2] sm:$0x3] %vm19, %v18
  %v21 = vld [vmem:[%s0] sm:$0x3]
  %v23 = vlaneseq
  %v24 = vshrl.u32 %v23, 7
  %v25 = vsub.s32 0, %v24
  %v26 = vrot.slane %v17, %v25
  %v28 = vmul.f32 %v18, %v26
  %v29 = vadd.f32 %v21, %v28
  %s30 = scalar_lea.vmem %s2, 2
  %31 = vst.msk [vmem:[%s30] sm:$0x3] %vm19, %v29
  %s32 = scalar_lea.vmem %s0, 2
  %v33 = vld [vmem:[%s32] sm:$0x3]
  %v34 = vmul.f32 %v29, %v26
  %v35 = vadd.f32 %v33, %v34
  %s36 = scalar_lea.vmem %s2, 4
  %37 = vst.msk [vmem:[%s36] sm:$0x3] %vm19, %v35
  %s38 = scalar_lea.vmem %s0, 4
  %v39 = vld [vmem:[%s38] sm:$0x3]
  %v40 = vmul.f32 %v35, %v26
  %v41 = vadd.f32 %v39, %v40
  %s42 = scalar_lea.vmem %s2, 6
  %43 = vst.msk [vmem:[%s42] sm:$0x3] %vm19, %v41
  %s44 = scalar_lea.vmem %s0, 6
  %v45 = vld [vmem:[%s44] sm:$0x3]
  %v46 = vmul.f32 %v41, %v26
  %v47 = vadd.f32 %v45, %v46
  %s48 = scalar_lea.vmem %s2, 8
  %49 = vst.msk [vmem:[%s48] sm:$0x3] %vm19, %v47
  %s50 = scalar_lea.vmem %s0, 8
  %v51 = vld [vmem:[%s50] sm:$0x3]
  %v52 = vmul.f32 %v47, %v26
  %v53 = vadd.f32 %v51, %v52
  %s54 = scalar_lea.vmem %s2, 10
  %55 = vst.msk [vmem:[%s54] sm:$0x3] %vm19, %v53
  %s56 = scalar_lea.vmem %s0, 10
  %v57 = vld [vmem:[%s56] sm:$0x3]
  %v58 = vmul.f32 %v53, %v26
  %v59 = vadd.f32 %v57, %v58
  %s60 = scalar_lea.vmem %s2, 12
  %61 = vst.msk [vmem:[%s60] sm:$0x3] %vm19, %v59
  %s62 = scalar_lea.vmem %s0, 12
  %v63 = vld [vmem:[%s62] sm:$0x3]
  %v64 = vmul.f32 %v59, %v26
  %v65 = vadd.f32 %v63, %v64
  %s66 = scalar_lea.vmem %s2, 14
  %67 = vst.msk [vmem:[%s66] sm:$0x3] %vm19, %v65
  %s68 = scalar_lea.vmem %s0, 14
  %v69 = vld [vmem:[%s68] sm:$0x3]
  %v70 = vmul.f32 %v65, %v26
  %v71 = vadd.f32 %v69, %v70
  %72 = vst.msk [vmem:[#allocation2] sm:$0x3] %vm19, %v71
  // Predicated region
  $region14: #{rwkv_block_forward.2} parent=0 // pred_check
    _
  $region15: #{rwkv_block_forward.2} parent=0 // pred_check_branch
    %74 = sbr.rel (0) target = $region17
  $region16: #{rwkv_block_forward.2} parent=0 // pred_region
    _
  $region17: #{rwkv_block_forward.2} parent=0 // pred_fallthru
    _
  // Predicated region
  $region18: #{rwkv_block_forward.2} parent=0 // pred_check
    _
  $region19: #{rwkv_block_forward.2} parent=0 // pred_check_branch
    %76 = sbr.rel (0) target = $region21
  $region20: #{rwkv_block_forward.2} parent=0 // pred_region
    _
  $region21: #{rwkv_block_forward.2} parent=0 // pred_fallthru
    _

// kernel: rwkv_block_forward.3
$region0: #{rwkv_block_forward.3}
  #allocation0 [shape = 'u32[]', space=smem, size = 0x4, offset = 0x4, fixed_abs, tag = 'smem constant byte address 0x4 - core index']
  #allocation1 [shape = 'u32[144,128]{1,0:T(1,128)}', space=vmem, size = 0x12000, scoped, tag = 'internal scratch']
  %s0 = inlined_call_operand.vmem [shape: f32[16,32], index: 0, kind: input, shape index: {}]
  %s1 = inlined_call_operand.vmem [shape: f32[16,32], index: 1, kind: input, shape index: {}]
  %s2 = inlined_call_operand.vmem [shape: f32[32,64], index: 2, kind: input, shape index: {}]
  %s3 = inlined_call_operand.vmem [shape: f32[32,64], index: 3, kind: input, shape index: {}]
  %s4 = inlined_call_operand.vmem [shape: f32[16,32], index: 4, kind: output, shape index: {}]
  %s5 = sld [smem:[#allocation0]]
  $region26: #{rwkv_block_forward.3} parent=0
    _
  %s7 = ssub.s32 1, %s5
  %s8 = scalar_select 0, %s7, %s5
  // Predicated region
  $region2: #{rwkv_block_forward.3} parent=0 // pred_check
    _
  $region3: #{rwkv_block_forward.3} parent=0 // pred_check_branch
    %10 = sbr.rel (0) target = $region5
  $region4: #{rwkv_block_forward.3} parent=0 // pred_region
    _
  $region5: #{rwkv_block_forward.3} parent=0 // pred_fallthru
    _
  // Predicated region
  $region6: #{rwkv_block_forward.3} parent=0 // pred_check
    _
  $region7: #{rwkv_block_forward.3} parent=0 // pred_check_branch
    %12 = sbr.rel (0) target = $region9
  $region8: #{rwkv_block_forward.3} parent=0 // pred_region
    _
  $region9: #{rwkv_block_forward.3} parent=0 // pred_fallthru
    _
  // Predicated region
  $region10: #{rwkv_block_forward.3} parent=0 // pred_check
    _
  $region11: #{rwkv_block_forward.3} parent=0 // pred_check_branch
    %14 = sbr.rel (0) target = $region13
  $region12: #{rwkv_block_forward.3} parent=0 // pred_region
    _
  $region13: #{rwkv_block_forward.3} parent=0 // pred_fallthru
    _
  // Predicated region
  $region14: #{rwkv_block_forward.3} parent=0 // pred_check
    _
  $region15: #{rwkv_block_forward.3} parent=0 // pred_check_branch
    %16 = sbr.rel (0) target = $region17
  $region16: #{rwkv_block_forward.3} parent=0 // pred_region
    _
  $region17: #{rwkv_block_forward.3} parent=0 // pred_fallthru
    _
  %v17 = vld [vmem:[%s0] sm:$0xff]
  %v18 = vld [vmem:[%s0 + $0x8] sm:$0xff]
  %v19 = vld [vmem:[%s2] sm:$0xff]
  %v20 = vld [vmem:[%s2 + $0x8] sm:$0xff]
  %v21 = vld [vmem:[%s2 + $0x10] sm:$0xff]
  %v22 = vld [vmem:[%s2 + $0x18] sm:$0xff]
  %v23 = vld [vmem:[%s1] sm:$0xff]
  %v24 = vld [vmem:[%s1 + $0x8] sm:$0xff]
  %v25 = vld [vmem:[%s3] sm:$0xff]
  %v26 = vld [vmem:[%s3 + $0x8] sm:$0xff]
  %v27 = vld [vmem:[%s3 + $0x10] sm:$0xff]
  %v28 = vld [vmem:[%s3 + $0x18] sm:$0xff]
  %vm29 = vcmask 261120
  %v31 = vsel %vm29, %v23, 0
  %v34 = vsel %vm29, %v24, 0
  %36 = vmatprep.subr.mxu0 0.0
  %37 = vmatpush1.msra.mxu0 0.0
  %38 = vmatprep.subr.mxu0 0.0
  %39 = vmatpush1.msra.mxu0 0.0
  %40 = vmatprep.subr.mxu0 0.0
  %41 = vmatpush1.msra.mxu0 0.0
  %42 = vmatprep.subr.mxu0 0.0
  %43 = vmatpush1.msra.mxu0 0.0
  %44 = vmatprep.subr.mxu0 0.0
  %45 = vmatpush1.msra.mxu0 0.0
  %46 = vmatprep.subr.mxu0 0.0
  %47 = vmatpush1.msra.mxu0 0.0
  %48 = vmatprep.subr.mxu0 0.0
  %49 = vmatpush1.msra.mxu0 0.0
  %50 = vmatprep.subr.mxu0 0.0
  %51 = vmatpush1.msra.mxu0 0.0
  %52 = vmatprep.subr.mxu0 0.0
  %53 = vmatpush1.msra.mxu0 0.0
  %54 = vmatprep.subr.mxu0 0.0
  %55 = vmatpush1.msra.mxu0 0.0
  %56 = vmatprep.subr.mxu0 0.0
  %57 = vmatpush1.msra.mxu0 0.0
  %58 = vmatprep.subr.mxu0 0.0
  %59 = vmatpush1.msra.mxu0 0.0
  %60 = vmatprep.subr.mxu0 0.0
  %61 = vmatpush1.msra.mxu0 %v28
  %62 = vmatprep.subr.mxu0 0.0
  %63 = vmatpush1.msra.mxu0 %v27
  %64 = vmatprep.subr.mxu0 0.0
  %65 = vmatpush1.msra.mxu0 %v26
  %66 = vmatprep.subr.mxu0 0.0
  %67 = vmatpush1.msra.mxu0 %v25
  %68 = vmatprep.subr.mxu0 0.0
  %69 = vmatpush2.msra.mxu0 0.0
  %70 = vmatprep.subr.mxu0 0.0
  %71 = vmatpush2.msra.mxu0 0.0
  %72 = vmatprep.subr.mxu0 0.0
  %73 = vmatpush2.msra.mxu0 0.0
  %74 = vmatprep.subr.mxu0 0.0
  %75 = vmatpush2.msra.mxu0 0.0
  %76 = vmatprep.subr.mxu0 0.0
  %77 = vmatpush2.msra.mxu0 0.0
  %78 = vmatprep.subr.mxu0 0.0
  %79 = vmatpush2.msra.mxu0 0.0
  %80 = vmatprep.subr.mxu0 0.0
  %81 = vmatpush2.msra.mxu0 0.0
  %82 = vmatprep.subr.mxu0 0.0
  %83 = vmatpush2.msra.mxu0 0.0
  %84 = vmatprep.subr.mxu0 0.0
  %85 = vmatpush2.msra.mxu0 0.0
  %86 = vmatprep.subr.mxu0 0.0
  %87 = vmatpush2.msra.mxu0 0.0
  %88 = vmatprep.subr.mxu0 0.0
  %89 = vmatpush2.msra.mxu0 0.0
  %90 = vmatprep.subr.mxu0 0.0
  %91 = vmatpush2.msra.mxu0 0.0
  %92 = vmatprep.subr.mxu0 0.0
  %93 = vmatpush2.msra.mxu0 0.0
  %94 = vmatprep.subr.mxu0 0.0
  %95 = vmatpush2.msra.mxu0 0.0
  %96 = vmatprep.subr.mxu0 0.0
  %97 = vmatpush2.msra.mxu0 0.0
  %98 = vmatprep.subr.mxu0 0.0
  %99 = vmatpush2.msra.mxu0 0.0
  %100 = vmatprep.mubr.f32.mxu0 0.0
  %101 = vmatmul.mubr.f32.gmra.mxu0 %v31
  %v102 = vpop.f32.mrf.mxu0
  %v103 = vadd.f32 0.0, %v102
  %v104 = vpop.f32.mrf.mxu0
  %105 = vmatprep.mubr.f32.mxu0 0.0
  %106 = vmatmul.mubr.f32.gmra.mxu0 %v34
  %v107 = vpop.f32.mrf.mxu0
  %v108 = vadd.f32 0.0, %v107
  %v109 = vpop.f32.mrf.mxu0
  %110 = vdwg.mxu0
  %v112 = vsel %vm29, %v17, 0
  %v115 = vsel %vm29, %v18, 0
  %117 = vmatprep.subr.mxu0 0.0
  %118 = vmatpush1.msra.mxu0 0.0
  %119 = vmatprep.subr.mxu0 0.0
  %120 = vmatpush1.msra.mxu0 0.0
  %121 = vmatprep.subr.mxu0 0.0
  %122 = vmatpush1.msra.mxu0 0.0
  %123 = vmatprep.subr.mxu0 0.0
  %124 = vmatpush1.msra.mxu0 0.0
  %125 = vmatprep.subr.mxu0 0.0
  %126 = vmatpush1.msra.mxu0 0.0
  %127 = vmatprep.subr.mxu0 0.0
  %128 = vmatpush1.msra.mxu0 0.0
  %129 = vmatprep.subr.mxu0 0.0
  %130 = vmatpush1.msra.mxu0 0.0
  %131 = vmatprep.subr.mxu0 0.0
  %132 = vmatpush1.msra.mxu0 0.0
  %133 = vmatprep.subr.mxu0 0.0
  %134 = vmatpush1.msra.mxu0 0.0
  %135 = vmatprep.subr.mxu0 0.0
  %136 = vmatpush1.msra.mxu0 0.0
  %137 = vmatprep.subr.mxu0 0.0
  %138 = vmatpush1.msra.mxu0 0.0
  %139 = vmatprep.subr.mxu0 0.0
  %140 = vmatpush1.msra.mxu0 0.0
  %141 = vmatprep.subr.mxu0 0.0
  %142 = vmatpush1.msra.mxu0 %v22
  %143 = vmatprep.subr.mxu0 0.0
  %144 = vmatpush1.msra.mxu0 %v21
  %145 = vmatprep.subr.mxu0 0.0
  %146 = vmatpush1.msra.mxu0 %v20
  %147 = vmatprep.subr.mxu0 0.0
  %148 = vmatpush1.msra.mxu0 %v19
  %149 = vmatprep.subr.mxu0 0.0
  %150 = vmatpush2.msra.mxu0 0.0
  %151 = vmatprep.subr.mxu0 0.0
  %152 = vmatpush2.msra.mxu0 0.0
  %153 = vmatprep.subr.mxu0 0.0
  %154 = vmatpush2.msra.mxu0 0.0
  %155 = vmatprep.subr.mxu0 0.0
  %156 = vmatpush2.msra.mxu0 0.0
  %157 = vmatprep.subr.mxu0 0.0
  %158 = vmatpush2.msra.mxu0 0.0
  %159 = vmatprep.subr.mxu0 0.0
  %160 = vmatpush2.msra.mxu0 0.0
  %161 = vmatprep.subr.mxu0 0.0
  %162 = vmatpush2.msra.mxu0 0.0
  %163 = vmatprep.subr.mxu0 0.0
  %164 = vmatpush2.msra.mxu0 0.0
  %165 = vmatprep.subr.mxu0 0.0
  %166 = vmatpush2.msra.mxu0 0.0
  %167 = vmatprep.subr.mxu0 0.0
  %168 = vmatpush2.msra.mxu0 0.0
  %169 = vmatprep.subr.mxu0 0.0
  %170 = vmatpush2.msra.mxu0 0.0
  %171 = vmatprep.subr.mxu0 0.0
  %172 = vmatpush2.msra.mxu0 0.0
  %173 = vmatprep.subr.mxu0 0.0
  %174 = vmatpush2.msra.mxu0 0.0
  %175 = vmatprep.subr.mxu0 0.0
  %176 = vmatpush2.msra.mxu0 0.0
  %177 = vmatprep.subr.mxu0 0.0
  %178 = vmatpush2.msra.mxu0 0.0
  %179 = vmatprep.subr.mxu0 0.0
  %180 = vmatpush2.msra.mxu0 0.0
  %181 = vmatprep.mubr.f32.mxu0 0.0
  %182 = vmatmul.mubr.f32.gmra.mxu0 %v112
  %v183 = vpop.f32.mrf.mxu0
  %v184 = vadd.f32 %v103, %v183
  %v185 = vpop.f32.mrf.mxu0
  %186 = vmatprep.mubr.f32.mxu0 0.0
  %187 = vmatmul.mubr.f32.gmra.mxu0 %v115
  %v188 = vpop.f32.mrf.mxu0
  %v189 = vadd.f32 %v108, %v188
  %v190 = vpop.f32.mrf.mxu0
  %191 = vdwg.mxu0
  %v192 = vxor.u32 %v184, 2147483648
  %v193 = vxor.u32 %v189, 2147483648
  %v194 = vmul.f32 %v192, 1.442695
  %v195 = vpow.pop %v194
  %v196 = vmul.f32 %v193, 1.442695
  %v197 = vpow.pop %v196
  %v198 = vadd.f32 %v195, 1.0
  %v199 = vadd.f32 %v197, 1.0
  %v200 = vrcp.pop %v198
  %v201 = vmul.f32 1.0, %v200
  %v202 = vrcp.pop %v199
  %v203 = vmul.f32 1.0, %v202
  %206 = vrot.lane.b32.xlu0 %v184, 32
  %v207 = vpop.permute.xlu0 %206
  %208 = vrot.lane.b32.xlu0 %v189, 32
  %v209 = vpop.permute.xlu0 %208
  %v212 = vmul.f32 %v201, %v207
  %v213 = vmul.f32 %v203, %v209
  %216 = vrot.lane.b32.xlu0 %v212, 96
  %v217 = vpop.permute.xlu0 %216
  %218 = vrot.lane.b32.xlu0 %v213, 96
  %v219 = vpop.permute.xlu0 %218
  %222 = vst.msk [vmem:[%s4] sm:$0xff] %vm29, %v217
  %223 = vst.msk [vmem:[%s4 + $0x8] sm:$0xff] %vm29, %v219
  // Predicated region
  $region18: #{rwkv_block_forward.3} parent=0 // pred_check
    _
  $region19: #{rwkv_block_forward.3} parent=0 // pred_check_branch
    %225 = sbr.rel (0) target = $region21
  $region20: #{rwkv_block_forward.3} parent=0 // pred_region
    _
  $region21: #{rwkv_block_forward.3} parent=0 // pred_fallthru
    _
  // Predicated region
  $region22: #{rwkv_block_forward.3} parent=0 // pred_check
    _
  $region23: #{rwkv_block_forward.3} parent=0 // pred_check_branch
    %227 = sbr.rel (0) target = $region25
  $region24: #{rwkv_block_forward.3} parent=0 // pred_region
    _
  $region25: #{rwkv_block_forward.3} parent=0 // pred_fallthru
    _

</llo_original>
